<compile_context>
chip_gen: v7x
topology: tpu7x:2x2x1
jax: 0.10.0
libtpu: 0.0.40
codegen_flags: <defaults>
</compile_context>

<pallas_src>
import functools

import jax
import jax.numpy as jnp
import numpy as np
from jax.experimental import pallas as pl
from jax.experimental.pallas import tpu as pltpu

# ----------------------------- model config ---------------------------------
VOCAB = 128
EMBED = 32
N_HEAD = 4
HEAD_DIM = EMBED // N_HEAD
ROTARY_DIM = HEAD_DIM          # full rotary on each head
N_LAYER = 2
NUM_SWITCHES = 2
RANK = 4
EPSILON = 1e-3
INIT_VAR = 1e-2
LN_EPS = 1e-5


# =============================================================================
# Pallas kernel: fused Projected_Adaptor lm_head + shifted cross entropy
# =============================================================================
def _fused_switch_lm_head_ce_kernel(h_ref, sv_ref, p1_ref, p2w_ref, wt_ref,
                                    lbl_ref, valid_ref,
                                    logits_ref, ptl_ref, lsum_ref,
                                    *, epsilon):
    # h: (N, D) rows = flattened (batch, seq)
    h = h_ref[...]

    # low-rank switch path: (N, D) @ (D, K*r) -> (N, K*r), scaled per row/switch
    # on the tiny intermediate (K*r = 8 lanes) instead of a full (S, D) delta.
    t = jnp.dot(h, p1_ref[...], preferred_element_type=jnp.float32)
    t = t * sv_ref[...]

    # lane-dense logits on V: base lm_head plus the correction folded into V.
    logits = (jnp.dot(h, wt_ref[...], preferred_element_type=jnp.float32)
              + epsilon * jnp.dot(t, p2w_ref[...],
                                  preferred_element_type=jnp.float32))
    logits_ref[...] = logits

    # fused shifted cross entropy while logits are still resident.
    m = jnp.max(logits, axis=-1, keepdims=True)
    lse = m + jnp.log(jnp.sum(jnp.exp(logits - m), axis=-1, keepdims=True))
    vid = jax.lax.broadcasted_iota(jnp.int32, logits.shape, 1)
    # NOTE: assumes labels are in-range (valid vocab ids); out-of-range labels
    # would silently reduce to lse (no gather on TPU here by design).
    picked = jnp.sum(jnp.where(vid == lbl_ref[...], logits, 0.0),
                     axis=-1, keepdims=True)
    ptl = (lse - picked) * valid_ref[...]            # mask out last token of each seq
    ptl_ref[...] = ptl
    lsum_ref[...] = jnp.sum(ptl, axis=0, keepdims=True)   # (1, 1) masked sum


def switched_lm_head_with_loss(hidden, switch_values, proj1, proj2, lm_head_w,
                               input_ids, epsilon):
    """Projected_Adaptor('output') lm_head + per-token CE in one pallas_call."""
    B, S, D = hidden.shape
    V = lm_head_w.shape[0]
    K, _, r = proj1.shape
    N = B * S

    # --- wrapper-side layout plumbing (tiny one-time XLA ops) -----------------
    h2d = hidden.reshape(N, D).astype(jnp.float32)
    w_t = lm_head_w.T.astype(jnp.float32)                         # (D, V) lane-dense on V
    p1_cat = jnp.transpose(proj1, (1, 0, 2)).reshape(D, K * r)    # (D, K*r)
    # fold P2 into the lm_head:  P2W[k] = P2[k]^T @ W^T  ->  (K*r, V)
    p2w_cat = jnp.einsum("kdr,dv->krv", proj2, w_t).reshape(K * r, V)
    # per-row, per-(switch,rank) scale: row i belongs to batch i // S
    sv_exp = jnp.repeat(jnp.repeat(switch_values.astype(jnp.float32), S, axis=0),
                        r, axis=1)                                # (N, K*r)
    # shifted labels (labels = input_ids): label of row (b, t) is input_ids[b, t+1]
    labels = jnp.concatenate(
        [input_ids[:, 1:], jnp.zeros((B, 1), input_ids.dtype)], axis=1
    ).astype(jnp.int32).reshape(N, 1)
    valid = jnp.concatenate(
        [jnp.ones((B, S - 1), jnp.float32), jnp.zeros((B, 1), jnp.float32)],
        axis=1).reshape(N, 1)

    kernel = functools.partial(_fused_switch_lm_head_ce_kernel, epsilon=epsilon)
    vmem = pltpu.MemorySpace.VMEM
    logits2d, ptl2d, lsum = pl.pallas_call(
        kernel,
        out_shape=(
            jax.ShapeDtypeStruct((N, V), jnp.float32),   # logits
            jax.ShapeDtypeStruct((N, 1), jnp.float32),   # per-token loss (masked)
            jax.ShapeDtypeStruct((1, 1), jnp.float32),   # masked loss sum
        ),
        in_specs=[pl.BlockSpec(memory_space=vmem)] * 7,
        out_specs=(pl.BlockSpec(memory_space=vmem),) * 3,
    )(h2d, sv_exp, p1_cat, p2w_cat, w_t, labels, valid)

    logits = logits2d.reshape(B, S, V)
    per_token_loss = ptl2d.reshape(B, S)[:, :-1]
    loss = lsum[0, 0] / jnp.float32(B * (S - 1))
    return loss, logits, per_token_loss


# =============================================================================
# Frozen GPT-J backbone (plain JAX, deterministic synthetic small config)
# =============================================================================
def layer_norm(x, g, b):
    mu = jnp.mean(x, axis=-1, keepdims=True)
    var = jnp.mean((x - mu) ** 2, axis=-1, keepdims=True)
    return (x - mu) / jnp.sqrt(var + LN_EPS) * g + b


def gelu_new(x):
    return 0.5 * x * (1.0 + jnp.tanh(jnp.sqrt(2.0 / jnp.pi) *
                                     (x + 0.044715 * x ** 3)))


def rotary_sincos(seq_len, rotary_dim):
    inv_freq = 1.0 / (10000.0 ** (jnp.arange(0, rotary_dim, 2,
                                              dtype=jnp.float32) / rotary_dim))
    t = jnp.arange(seq_len, dtype=jnp.float32)[:, None] * inv_freq[None, :]
    return jnp.sin(t), jnp.cos(t)          # (S, rotary_dim//2) each


def rotate_every_two(x):
    x1 = x[..., ::2]
    x2 = x[..., 1::2]
    return jnp.stack([-x2, x1], axis=-1).reshape(x.shape)


def apply_rotary(x, sin, cos):
    # x: (B, S, H, hd), sin/cos: (S, hd//2)
    sin = jnp.repeat(sin, 2, axis=-1)[None, :, None, :]
    cos = jnp.repeat(cos, 2, axis=-1)[None, :, None, :]
    return x * cos + rotate_every_two(x) * sin


def gptj_attention(p, x, attention_mask):
    B, S, D = x.shape
    H, hd = N_HEAD, HEAD_DIM
    q = (x @ p["wq"].T).reshape(B, S, H, hd)
    k = (x @ p["wk"].T).reshape(B, S, H, hd)
    v = (x @ p["wv"].T).reshape(B, S, H, hd)
    sin, cos = rotary_sincos(S, ROTARY_DIM)
    q = apply_rotary(q, sin, cos)
    k = apply_rotary(k, sin, cos)
    q = q.transpose(0, 2, 1, 3).astype(jnp.float32)       # (B,H,S,hd)
    k = k.transpose(0, 2, 1, 3).astype(jnp.float32)
    v = v.transpose(0, 2, 1, 3)
    scores = (q @ k.transpose(0, 1, 3, 2)) / jnp.sqrt(jnp.float32(hd))
    # single combined causal+padding mask (no double float-min accumulation)
    causal = jnp.tril(jnp.ones((S, S), dtype=bool))[None, None]
    keep = jnp.logical_and(causal, attention_mask[:, None, None, :] > 0)
    scores = jnp.where(keep, scores, jnp.finfo(jnp.float32).min)
    probs = jax.nn.softmax(scores, axis=-1)
    ctx = (probs @ v).transpose(0, 2, 1, 3).reshape(B, S, D)
    return ctx @ p["wo"].T


def gptj_block(p, x, attention_mask):
    residual = x
    h = layer_norm(x, p["ln1_g"], p["ln1_b"])
    attn_out = gptj_attention(p, h, attention_mask)
    mlp_out = (gelu_new(h @ p["fc_in_w"].T + p["fc_in_b"]) @ p["fc_out_w"].T
               + p["fc_out_b"])
    return attn_out + mlp_out + residual          # GPT-J parallel residual


def gptj_backbone(params, input_ids, attention_mask):
    x = params["wte"][input_ids]                  # (B, S, D)
    for lp in params["layers"]:
        x = gptj_block(lp, x, attention_mask)
    return layer_norm(x, params["ln_f_g"], params["ln_f_b"])


# =============================================================================
# Parameter init (deterministic, synthetic) + full forward
# =============================================================================
def init_params(key):
    keys = iter(jax.random.split(key, 64))

    def nrm(shape, scale=0.02):
        return scale * jax.random.normal(next(keys), shape, jnp.float32)

    params = {
        "wte": nrm((VOCAB, EMBED)),
        "ln_f_g": jnp.ones((EMBED,), jnp.float32),
        "ln_f_b": jnp.zeros((EMBED,), jnp.float32),
        "lm_head_w": nrm((VOCAB, EMBED)),
        # Projected_Adaptor parameters: randn(K, D, rank) * init_var
        "projector1": INIT_VAR * jax.random.normal(next(keys),
                                                   (NUM_SWITCHES, EMBED, RANK),
                                                   jnp.float32),
        "projector2": INIT_VAR * jax.random.normal(next(keys),
                                                   (NUM_SWITCHES, EMBED, RANK),
                                                   jnp.float32),
        "layers": [],
    }
    for _ in range(N_LAYER):
        params["layers"].append({
            "ln1_g": jnp.ones((EMBED,), jnp.float32),
            "ln1_b": jnp.zeros((EMBED,), jnp.float32),
            "wq": nrm((EMBED, EMBED)),
            "wk": nrm((EMBED, EMBED)),
            "wv": nrm((EMBED, EMBED)),
            "wo": nrm((EMBED, EMBED)),
            "fc_in_w": nrm((4 * EMBED, EMBED)),
            "fc_in_b": jnp.zeros((4 * EMBED,), jnp.float32),
            "fc_out_w": nrm((EMBED, 4 * EMBED)),
            "fc_out_b": jnp.zeros((EMBED,), jnp.float32),
        })
    return params


def forward(params, input_ids, attention_mask, switch_values):
    """Switching_GPTJModel.forward: set switch values, run LM with labels=input_ids."""
    hidden = gptj_backbone(params, input_ids, attention_mask)        # (B,S,D)
    loss, logits, per_token_loss = switched_lm_head_with_loss(
        hidden, switch_values, params["projector1"], params["projector2"],
        params["lm_head_w"], input_ids, EPSILON)
    return loss, logits, per_token_loss


# --------------------------- pure-JAX references -----------------------------
def ref_switched_logits(hidden, sv, p1, p2, w, eps):
    t = jnp.einsum("bsd,kdr->bksr", hidden, p1) * sv[:, :, None, None]
    delta = jnp.einsum("bksr,kdr->bsd", t, p2)
    return (hidden + eps * delta) @ w.T


def ref_token_ce(shift_logits, shift_labels):
    logp = jax.nn.log_softmax(shift_logits, axis=-1)
    return -jnp.take_along_axis(logp, shift_labels[..., None], axis=-1)[..., 0]


# =============================================================================
if __name__ == "__main__":
    key = jax.random.PRNGKey(0)
    kp, kid, ksv = jax.random.split(key, 3)

    B, S = 2, 8
    params = init_params(kp)
    input_ids = jax.random.randint(kid, (B, S), 0, VOCAB, dtype=jnp.int32)
    attention_mask = jnp.ones((B, S), dtype=jnp.int32)
    switch_values = jnp.array([[1.0, -1.0], [0.5, 2.0]], dtype=jnp.float32)

    # End-to-end forward (loss, logits, per-token loss), as the module's forward().
    loss, logits, per_tok = jax.jit(forward)(params, input_ids,
                                             attention_mask, switch_values)
    jax.block_until_ready((loss, logits, per_tok))

    # Pure-JAX reference of the switch head + shifted CE on the same hidden states.
    hidden = gptj_backbone(params, input_ids, attention_mask)
    logits_ref = ref_switched_logits(hidden, switch_values,
                                     params["projector1"], params["projector2"],
                                     params["lm_head_w"], EPSILON)
    labels = input_ids[:, 1:].astype(jnp.int32)
    ptl_ref = ref_token_ce(logits_ref[:, :-1, :], labels)
    loss_ref = jnp.mean(ptl_ref)

    np.testing.assert_allclose(np.asarray(logits), np.asarray(logits_ref),
                               rtol=2e-3, atol=2e-3)
    np.testing.assert_allclose(np.asarray(per_tok), np.asarray(ptl_ref),
                               rtol=2e-3, atol=2e-3)
    np.testing.assert_allclose(float(loss), float(loss_ref),
                               rtol=2e-3, atol=2e-3)

    assert logits.shape == (B, S, VOCAB) and per_tok.shape == (B, S - 1)
    assert np.isfinite(float(loss))

    print("KERNEL_OK")
</pallas_src>

<mosaic_0001>
module attributes {stable_mosaic.version = 11 : i64} {
  func.func @_fused_switch_lm_head_ce_kernel(%arg0: memref<16x32xf32, #tpu.memory_space<vmem>>, %arg1: memref<16x8xf32, #tpu.memory_space<vmem>>, %arg2: memref<32x8xf32, #tpu.memory_space<vmem>>, %arg3: memref<8x128xf32, #tpu.memory_space<vmem>>, %arg4: memref<32x128xf32, #tpu.memory_space<vmem>>, %arg5: memref<16x1xi32, #tpu.memory_space<vmem>>, %arg6: memref<16x1xf32, #tpu.memory_space<vmem>>, %arg7: memref<16x128xf32, #tpu.memory_space<vmem>>, %arg8: memref<16x1xf32, #tpu.memory_space<vmem>>, %arg9: memref<1x1xf32, #tpu.memory_space<vmem>>) attributes {dimension_semantics = [], scalar_prefetch = 0 : i64, scratch_operands = 0 : i64, tpu.core_type = #tpu.core_type<tc>} {
    %c0 = arith.constant 0 : index
    %c0_0 = arith.constant 0 : index
    %0 = vector.load %arg0[%c0, %c0_0] : memref<16x32xf32, #tpu.memory_space<vmem>>, vector<16x32xf32>
    %c0_1 = arith.constant 0 : index
    %c0_2 = arith.constant 0 : index
    %1 = vector.load %arg2[%c0_1, %c0_2] : memref<32x8xf32, #tpu.memory_space<vmem>>, vector<32x8xf32>
    %cst = arith.constant dense<0.000000e+00> : vector<16x8xf32>
    %2 = tpu.matmul %0, %1, %cst {dimension_numbers = #tpu.dot_dimension_numbers<[1], [0], [0], [1], [0, 0, 1, 1], [], []>} : vector<16x32xf32>, vector<32x8xf32>, vector<16x8xf32> -> vector<16x8xf32>
    %c0_3 = arith.constant 0 : index
    %c0_4 = arith.constant 0 : index
    %3 = vector.load %arg1[%c0_3, %c0_4] : memref<16x8xf32, #tpu.memory_space<vmem>>, vector<16x8xf32>
    %4 = arith.mulf %2, %3 : vector<16x8xf32>
    %c0_5 = arith.constant 0 : index
    %c0_6 = arith.constant 0 : index
    %5 = vector.load %arg4[%c0_5, %c0_6] : memref<32x128xf32, #tpu.memory_space<vmem>>, vector<32x128xf32>
    %cst_7 = arith.constant dense<0.000000e+00> : vector<16x128xf32>
    %6 = tpu.matmul %0, %5, %cst_7 {dimension_numbers = #tpu.dot_dimension_numbers<[1], [0], [0], [1], [0, 0, 1, 1], [], []>} : vector<16x32xf32>, vector<32x128xf32>, vector<16x128xf32> -> vector<16x128xf32>
    %c0_8 = arith.constant 0 : index
    %c0_9 = arith.constant 0 : index
    %7 = vector.load %arg3[%c0_8, %c0_9] : memref<8x128xf32, #tpu.memory_space<vmem>>, vector<8x128xf32>
    %cst_10 = arith.constant dense<0.000000e+00> : vector<16x128xf32>
    %8 = tpu.matmul %4, %7, %cst_10 {dimension_numbers = #tpu.dot_dimension_numbers<[1], [0], [0], [1], [0, 0, 1, 1], [], []>} : vector<16x8xf32>, vector<8x128xf32>, vector<16x128xf32> -> vector<16x128xf32>
    %cst_11 = arith.constant 1.000000e-03 : f32
    %9 = vector.broadcast %cst_11 : f32 to vector<16x128xf32>
    %10 = arith.mulf %9, %8 : vector<16x128xf32>
    %11 = arith.addf %6, %10 : vector<16x128xf32>
    %c0_12 = arith.constant 0 : index
    %c0_13 = arith.constant 0 : index
    %12 = vector.load %arg7[%c0_12, %c0_13] : memref<16x128xf32, #tpu.memory_space<vmem>>, vector<16x128xf32>
    tpu.vector_store %arg7[%c0_12, %c0_13], %11 {strides = array<i32>} : memref<16x128xf32, #tpu.memory_space<vmem>>, vector<16x128xf32>,
    %cst_14 = arith.constant dense<0xFF800000> : vector<16xf32>
    %13 = vector.multi_reduction <maximumf>, %11, %cst_14 [1] : vector<16x128xf32> to vector<16xf32>
    %14 = vector.shape_cast %13 : vector<16xf32> to vector<16x1xf32>
    %15 = vector.broadcast %14 : vector<16x1xf32> to vector<16x128xf32>
    %16 = arith.subf %11, %15 : vector<16x128xf32>
    %17 = math.exp %16 : vector<16x128xf32>
    %cst_15 = arith.constant dense<0.000000e+00> : vector<16xf32>
    %18 = vector.multi_reduction <add>, %17, %cst_15 [1] : vector<16x128xf32> to vector<16xf32>
    %19 = vector.shape_cast %18 : vector<16xf32> to vector<16x1xf32>
    %20 = math.log %19 : vector<16x1xf32>
    %21 = arith.addf %14, %20 : vector<16x1xf32>
    %22 = tpu.iota {dimensions = array<i32: 1>} : vector<16x128xi32>
    %c0_16 = arith.constant 0 : index
    %c0_17 = arith.constant 0 : index
    %23 = vector.load %arg5[%c0_16, %c0_17] : memref<16x1xi32, #tpu.memory_space<vmem>>, vector<16x1xi32>
    %24 = vector.broadcast %23 : vector<16x1xi32> to vector<16x128xi32>
    %25 = arith.cmpi eq, %22, %24 : vector<16x128xi32>
    %cst_18 = arith.constant 0.000000e+00 : f32
    %26 = vector.broadcast %cst_18 : f32 to vector<16x128xf32>
    %27 = arith.select %25, %11, %26 : vector<16x128xi1>, vector<16x128xf32>
    %cst_19 = arith.constant dense<0.000000e+00> : vector<16xf32>
    %28 = vector.multi_reduction <add>, %27, %cst_19 [1] : vector<16x128xf32> to vector<16xf32>
    %29 = vector.shape_cast %28 : vector<16xf32> to vector<16x1xf32>
    %30 = arith.subf %21, %29 : vector<16x1xf32>
    %c0_20 = arith.constant 0 : index
    %c0_21 = arith.constant 0 : index
    %31 = vector.load %arg6[%c0_20, %c0_21] : memref<16x1xf32, #tpu.memory_space<vmem>>, vector<16x1xf32>
    %32 = arith.mulf %30, %31 : vector<16x1xf32>
    %c0_22 = arith.constant 0 : index
    %c0_23 = arith.constant 0 : index
    %33 = vector.load %arg8[%c0_22, %c0_23] : memref<16x1xf32, #tpu.memory_space<vmem>>, vector<16x1xf32>
    tpu.vector_store %arg8[%c0_22, %c0_23], %32 {strides = array<i32>} : memref<16x1xf32, #tpu.memory_space<vmem>>, vector<16x1xf32>,
    %cst_24 = arith.constant dense<0.000000e+00> : vector<1xf32>
    %34 = vector.multi_reduction <add>, %32, %cst_24 [0] : vector<16x1xf32> to vector<1xf32>
    %35 = vector.shape_cast %34 : vector<1xf32> to vector<1x1xf32>
    %c0_25 = arith.constant 0 : index
    %c0_26 = arith.constant 0 : index
    %36 = vector.load %arg9[%c0_25, %c0_26] : memref<1x1xf32, #tpu.memory_space<vmem>>, vector<1x1xf32>
    tpu.vector_store %arg9[%c0_25, %c0_26], %35 {strides = array<i32>} : memref<1x1xf32, #tpu.memory_space<vmem>>, vector<1x1xf32>,
    return
  }
}

</mosaic_0001>

<llo_original>
// kernel: neg.4
$region0: #{neg.4}
  #allocation0 [shape = 's32[1]{0}', space=sflag, size = 0x4, scoped, tag = 'scoped memory for neg.4']
  %s0 = inlined_call_operand.vmem [shape: f32[2,8,4,4], index: 0, kind: input, shape index: {}]
  %s1 = inlined_call_operand.vmem [shape: f32[2,8,4,4], index: 1, kind: output, shape index: {}]
  %v2 = vld [vmem:[%s0] sm:$0xf]
  %3 = xla_tuple %v2
  %4 = xla_tuple %3
  %v5 = vxor.u32 %v2, 2147483648
  %6 = xla_tuple %v5
  %7 = vst [vmem:[%s1] sm:$0xf] %v5
  %s8 = scalar_lea.vmem %s0, 16
  %v9 = vld [vmem:[%s8] sm:$0xf]
  %10 = xla_tuple %v9
  %11 = xla_tuple %10
  %v12 = vxor.u32 %v9, 2147483648
  %13 = xla_tuple %v12
  %s14 = scalar_lea.vmem %s1, 16
  %15 = vst [vmem:[%s14] sm:$0xf] %v12
  %s16 = scalar_lea.vmem %s0, 4
  %v17 = vld [vmem:[%s16] sm:$0xf]
  %18 = xla_tuple %v17
  %19 = xla_tuple %18
  %v20 = vxor.u32 %v17, 2147483648
  %21 = xla_tuple %v20
  %s22 = scalar_lea.vmem %s1, 4
  %23 = vst [vmem:[%s22] sm:$0xf] %v20
  %s24 = scalar_lea.vmem %s0, 20
  %v25 = vld [vmem:[%s24] sm:$0xf]
  %26 = xla_tuple %v25
  %27 = xla_tuple %26
  %v28 = vxor.u32 %v25, 2147483648
  %29 = xla_tuple %v28
  %s30 = scalar_lea.vmem %s1, 20
  %31 = vst [vmem:[%s30] sm:$0xf] %v28
  %s32 = scalar_lea.vmem %s0, 8
  %v33 = vld [vmem:[%s32] sm:$0xf]
  %34 = xla_tuple %v33
  %35 = xla_tuple %34
  %v36 = vxor.u32 %v33, 2147483648
  %37 = xla_tuple %v36
  %s38 = scalar_lea.vmem %s1, 8
  %39 = vst [vmem:[%s38] sm:$0xf] %v36
  %s40 = scalar_lea.vmem %s0, 24
  %v41 = vld [vmem:[%s40] sm:$0xf]
  %42 = xla_tuple %v41
  %43 = xla_tuple %42
  %v44 = vxor.u32 %v41, 2147483648
  %45 = xla_tuple %v44
  %s46 = scalar_lea.vmem %s1, 24
  %47 = vst [vmem:[%s46] sm:$0xf] %v44
  %s48 = scalar_lea.vmem %s0, 12
  %v49 = vld [vmem:[%s48] sm:$0xf]
  %50 = xla_tuple %v49
  %51 = xla_tuple %50
  %v52 = vxor.u32 %v49, 2147483648
  %53 = xla_tuple %v52
  %s54 = scalar_lea.vmem %s1, 12
  %55 = vst [vmem:[%s54] sm:$0xf] %v52
  %s56 = scalar_lea.vmem %s0, 28
  %v57 = vld [vmem:[%s56] sm:$0xf]
  %58 = xla_tuple %v57
  %59 = xla_tuple %58
  %v60 = vxor.u32 %v57, 2147483648
  %61 = xla_tuple %v60
  %s62 = scalar_lea.vmem %s1, 28
  %63 = vst [vmem:[%s62] sm:$0xf] %v60

// kernel: forward.1
$region0: #{forward.1}
  #allocation0 [shape = 'u32[]', space=smem, size = 0x4, offset = 0x4, fixed_abs, tag = 'smem constant byte address 0x4 - core index']
  #allocation1 [shape = 'u32[144,128]{1,0:T(1,128)}', space=vmem, size = 0x12000, scoped, tag = 'internal scratch']
  %s0 = inlined_call_operand.vmem [shape: f32[16,32], index: 0, kind: input, shape index: {}]
  %s1 = inlined_call_operand.vmem [shape: f32[16,8], index: 1, kind: input, shape index: {}]
  %s2 = inlined_call_operand.vmem [shape: f32[32,8], index: 2, kind: input, shape index: {}]
  %s3 = inlined_call_operand.vmem [shape: f32[8,128], index: 3, kind: input, shape index: {}]
  %s4 = inlined_call_operand.vmem [shape: f32[32,128], index: 4, kind: input, shape index: {}]
  %s5 = inlined_call_operand.vmem [shape: s32[16,1], index: 5, kind: input, shape index: {}]
  %s6 = inlined_call_operand.vmem [shape: f32[16,1], index: 6, kind: input, shape index: {}]
  %s7 = inlined_call_operand.hbm [shape: f32[16,128], index: 7, kind: output, shape index: {0}]
  %s8 = inlined_call_operand.vmem [shape: f32[16,1], index: 8, kind: output, shape index: {1}]
  %s9 = inlined_call_operand.hbm [shape: f32[1,1], index: 9, kind: output, shape index: {2}]
  %10 = xla_tuple %s7, %s8, %s9
  %s11 = sld [smem:[#allocation0]]
  $region54: #{forward.1} parent=0
    _
  %s13 = ssub.s32 1, %s11
  %s14 = scalar_select 0, %s13, %s11
  $region1: #{forward.1} parent=0
    #allocation2 [shape = 'u8[8192]{0}', space=vmem, size = 0x2000, scoped, tag = 'output window, operand 0, single buffered']
    #allocation3 [shape = 's32[1]{0}', space=sflag, size = 0x4, scoped, tag = 'scoped memory for forward.1']
    #allocation4 [shape = 'u8[512]{0}', space=vmem, size = 0x400, scoped, tag = 'output window, operand 2, single buffered']
    #allocation5 [shape = 's32[1]{0}', space=sflag, size = 0x4, scoped, tag = 'scoped memory for forward.1']
    %15 = vsyncpa [#allocation3], 0
    %16 = vsyncpa [#allocation5], 0
    // Predicated region
    $region2: #{forward.1} parent=1 // pred_check
      _
    $region3: #{forward.1} parent=1 // pred_check_branch
      %18 = sbr.rel (0) target = $region5
    $region4: #{forward.1} parent=1 // pred_region
      _
    $region5: #{forward.1} parent=1 // pred_fallthru
      _
    // Predicated region
    $region6: #{forward.1} parent=1 // pred_check
      _
    $region7: #{forward.1} parent=1 // pred_check_branch
      %20 = sbr.rel (0) target = $region9
    $region8: #{forward.1} parent=1 // pred_region
      _
    $region9: #{forward.1} parent=1 // pred_fallthru
      _
    // Predicated region
    $region10: #{forward.1} parent=1 // pred_check
      _
    $region11: #{forward.1} parent=1 // pred_check_branch
      %22 = sbr.rel (0) target = $region13
    $region12: #{forward.1} parent=1 // pred_region
      _
    $region13: #{forward.1} parent=1 // pred_fallthru
      _
    // Predicated region
    $region14: #{forward.1} parent=1 // pred_check
      _
    $region15: #{forward.1} parent=1 // pred_check_branch
      %24 = sbr.rel (0) target = $region17
    $region16: #{forward.1} parent=1 // pred_region
      _
    $region17: #{forward.1} parent=1 // pred_fallthru
      _
    // Predicated region
    $region18: #{forward.1} parent=1 // pred_check
      _
    $region19: #{forward.1} parent=1 // pred_check_branch
      %26 = sbr.rel (0) target = $region21
    $region20: #{forward.1} parent=1 // pred_region
      _
    $region21: #{forward.1} parent=1 // pred_fallthru
      _
    // Predicated region
    $region22: #{forward.1} parent=1 // pred_check
      _
    $region23: #{forward.1} parent=1 // pred_check_branch
      %28 = sbr.rel (0) target = $region25
    $region24: #{forward.1} parent=1 // pred_region
      _
    $region25: #{forward.1} parent=1 // pred_fallthru
      _
    // Predicated region
    $region26: #{forward.1} parent=1 // pred_check
      _
    $region27: #{forward.1} parent=1 // pred_check_branch
      %30 = sbr.rel (0) target = $region29
    $region28: #{forward.1} parent=1 // pred_region
      _
    $region29: #{forward.1} parent=1 // pred_fallthru
      _
    %v31 = vld [vmem:[%s0] sm:$0xff]
    %v32 = vld [vmem:[%s0 + $0x8] sm:$0xff]
    %v33 = vld [vmem:[%s2] sm:$0xff]
    %v34 = vld [vmem:[%s2 + $0x8] sm:$0xff]
    %v35 = vld [vmem:[%s2 + $0x10] sm:$0xff]
    %v36 = vld [vmem:[%s2 + $0x18] sm:$0xff]
    %vm37 = vcmask 261120
    %v39 = vsel %vm37, %v31, 0
    %v42 = vsel %vm37, %v32, 0
    %44 = vmatprep.subr.mxu0 0.0
    %45 = vmatpush1.msra.mxu0 %v33
    %46 = vmatprep.subr.mxu0 0.0
    %47 = vmatpush1.msra.mxu0 %v34
    %48 = vmatprep.subr.mxu0 0.0
    %49 = vmatpush1.msra.mxu0 %v35
    %50 = vmatprep.subr.mxu0 0.0
    %51 = vmatpush1.msra.mxu0 %v36
    %52 = vmatprep.subr.mxu0 0.0
    %53 = vmatpush1.msra.mxu0 0.0
    %54 = vmatprep.subr.mxu0 0.0
    %55 = vmatpush1.msra.mxu0 0.0
    %56 = vmatprep.subr.mxu0 0.0
    %57 = vmatpush1.msra.mxu0 0.0
    %58 = vmatprep.subr.mxu0 0.0
    %59 = vmatpush1.msra.mxu0 0.0
    %60 = vmatprep.subr.mxu0 0.0
    %61 = vmatpush1.msra.mxu0 0.0
    %62 = vmatprep.subr.mxu0 0.0
    %63 = vmatpush1.msra.mxu0 0.0
    %64 = vmatprep.subr.mxu0 0.0
    %65 = vmatpush1.msra.mxu0 0.0
    %66 = vmatprep.subr.mxu0 0.0
    %67 = vmatpush1.msra.mxu0 0.0
    %68 = vmatprep.subr.mxu0 0.0
    %69 = vmatpush1.msra.mxu0 0.0
    %70 = vmatprep.subr.mxu0 0.0
    %71 = vmatpush1.msra.mxu0 0.0
    %72 = vmatprep.subr.mxu0 0.0
    %73 = vmatpush1.msra.mxu0 0.0
    %74 = vmatprep.subr.mxu0 0.0
    %75 = vmatpush1.msra.mxu0 0.0
    %76 = vmatprep.subr.mxu0 0.0
    %77 = vmatpush1.msra.mxu0 0.0
    %78 = vmatprep.subr.mxu0 0.0
    %79 = vmatpush1.msra.mxu0 0.0
    %80 = vmatprep.subr.mxu0 0.0
    %81 = vmatpush1.msra.mxu0 0.0
    %82 = vmatprep.subr.mxu0 0.0
    %83 = vmatpush1.msra.mxu0 0.0
    %84 = vmatprep.subr.mxu0 0.0
    %85 = vmatpush1.msra.mxu0 0.0
    %86 = vmatprep.subr.mxu0 0.0
    %87 = vmatpush1.msra.mxu0 0.0
    %88 = vmatprep.subr.mxu0 0.0
    %89 = vmatpush1.msra.mxu0 0.0
    %90 = vmatprep.subr.mxu0 0.0
    %91 = vmatpush1.msra.mxu0 0.0
    %92 = vmatprep.subr.mxu0 0.0
    %93 = vmatpush1.msra.mxu0 0.0
    %94 = vmatprep.subr.mxu0 0.0
    %95 = vmatpush1.msra.mxu0 0.0
    %96 = vmatprep.subr.mxu0 0.0
    %97 = vmatpush1.msra.mxu0 0.0
    %98 = vmatprep.subr.mxu0 0.0
    %99 = vmatpush1.msra.mxu0 0.0
    %100 = vmatprep.subr.mxu0 0.0
    %101 = vmatpush1.msra.mxu0 0.0
    %102 = vmatprep.subr.mxu0 0.0
    %103 = vmatpush1.msra.mxu0 0.0
    %104 = vmatprep.subr.mxu0 0.0
    %105 = vmatpush1.msra.mxu0 0.0
    %106 = vmatprep.subr.mxu0 0.0
    %107 = vmatpush1.msra.mxu0 0.0
    %108 = vmatprep.mubr.f32.mxu0 0.0
    %109 = vmatmul.mubr.f32.gmra.mrb[0].mxu0 %v39
    %v110 = vpop.f32.mrb[0].mxu0
    %v111 = vadd.f32 0.0, %v110
    %v112 = vpop.f32.mrb[0].mxu0
    %113 = vmatprep.mubr.f32.mxu0 0.0
    %114 = vmatmul.mubr.f32.gmra.mrb[0].mxu0 %v42
    %v115 = vpop.f32.mrb[0].mxu0
    %v116 = vadd.f32 0.0, %v115
    %v117 = vpop.f32.mrb[0].mxu0
    %118 = vdwg.mxu0
    %v119 = vld [vmem:[%s1] sm:$0xff]
    %v120 = vld [vmem:[%s1 + $0x8] sm:$0xff]
    %v121 = vmul.f32 %v111, %v119
    %v122 = vmul.f32 %v116, %v120
    %v123 = vld [vmem:[%s4] sm:$0xff]
    %v124 = vld [vmem:[%s4 + $0x8] sm:$0xff]
    %v125 = vld [vmem:[%s4 + $0x10] sm:$0xff]
    %v126 = vld [vmem:[%s4 + $0x18] sm:$0xff]
    %v127 = vld [vmem:[%s3] sm:$0xff]
    %vm128 = vcmask 64512
    %v130 = vsel %vm128, %v121, 0
    %v133 = vsel %vm128, %v122, 0
    %135 = vmatprep.subr.mxu0 0.0
    %136 = vmatpush1.msra.mxu0 %v127
    %137 = vmatprep.subr.mxu0 0.0
    %138 = vmatpush1.msra.mxu0 0.0
    %139 = vmatprep.subr.mxu0 0.0
    %140 = vmatpush1.msra.mxu0 0.0
    %141 = vmatprep.subr.mxu0 0.0
    %142 = vmatpush1.msra.mxu0 0.0
    %143 = vmatprep.subr.mxu0 0.0
    %144 = vmatpush1.msra.mxu0 0.0
    %145 = vmatprep.subr.mxu0 0.0
    %146 = vmatpush1.msra.mxu0 0.0
    %147 = vmatprep.subr.mxu0 0.0
    %148 = vmatpush1.msra.mxu0 0.0
    %149 = vmatprep.subr.mxu0 0.0
    %150 = vmatpush1.msra.mxu0 0.0
    %151 = vmatprep.subr.mxu0 0.0
    %152 = vmatpush1.msra.mxu0 0.0
    %153 = vmatprep.subr.mxu0 0.0
    %154 = vmatpush1.msra.mxu0 0.0
    %155 = vmatprep.subr.mxu0 0.0
    %156 = vmatpush1.msra.mxu0 0.0
    %157 = vmatprep.subr.mxu0 0.0
    %158 = vmatpush1.msra.mxu0 0.0
    %159 = vmatprep.subr.mxu0 0.0
    %160 = vmatpush1.msra.mxu0 0.0
    %161 = vmatprep.subr.mxu0 0.0
    %162 = vmatpush1.msra.mxu0 0.0
    %163 = vmatprep.subr.mxu0 0.0
    %164 = vmatpush1.msra.mxu0 0.0
    %165 = vmatprep.subr.mxu0 0.0
    %166 = vmatpush1.msra.mxu0 0.0
    %167 = vmatprep.subr.mxu0 0.0
    %168 = vmatpush1.msra.mxu0 0.0
    %169 = vmatprep.subr.mxu0 0.0
    %170 = vmatpush1.msra.mxu0 0.0
    %171 = vmatprep.subr.mxu0 0.0
    %172 = vmatpush1.msra.mxu0 0.0
    %173 = vmatprep.subr.mxu0 0.0
    %174 = vmatpush1.msra.mxu0 0.0
    %175 = vmatprep.subr.mxu0 0.0
    %176 = vmatpush1.msra.mxu0 0.0
    %177 = vmatprep.subr.mxu0 0.0
    %178 = vmatpush1.msra.mxu0 0.0
    %179 = vmatprep.subr.mxu0 0.0
    %180 = vmatpush1.msra.mxu0 0.0
    %181 = vmatprep.subr.mxu0 0.0
    %182 = vmatpush1.msra.mxu0 0.0
    %183 = vmatprep.subr.mxu0 0.0
    %184 = vmatpush1.msra.mxu0 0.0
    %185 = vmatprep.subr.mxu0 0.0
    %186 = vmatpush1.msra.mxu0 0.0
    %187 = vmatprep.subr.mxu0 0.0
    %188 = vmatpush1.msra.mxu0 0.0
    %189 = vmatprep.subr.mxu0 0.0
    %190 = vmatpush1.msra.mxu0 0.0
    %191 = vmatprep.subr.mxu0 0.0
    %192 = vmatpush1.msra.mxu0 0.0
    %193 = vmatprep.subr.mxu0 0.0
    %194 = vmatpush1.msra.mxu0 0.0
    %195 = vmatprep.subr.mxu0 0.0
    %196 = vmatpush1.msra.mxu0 0.0
    %197 = vmatprep.subr.mxu0 0.0
    %198 = vmatpush1.msra.mxu0 0.0
    %199 = vmatprep.mubr.f32.mxu0 0.0
    %200 = vmatmul.mubr.f32.gmra.mrb[0].mxu0 %v130
    %v201 = vpop.f32.mrb[0].mxu0
    %v202 = vadd.f32 0.0, %v201
    %v203 = vpop.f32.mrb[0].mxu0
    %204 = vmatprep.mubr.f32.mxu0 0.0
    %205 = vmatmul.mubr.f32.gmra.mrb[0].mxu0 %v133
    %v206 = vpop.f32.mrb[0].mxu0
    %v207 = vadd.f32 0.0, %v206
    %v208 = vpop.f32.mrb[0].mxu0
    %209 = vdwg.mxu0
    %v210 = vmul.f32 %v202, 0.001
    %v211 = vmul.f32 %v207, 0.001
    %212 = vmatprep.subr.mxu0 0.0
    %213 = vmatpush1.msra.mxu0 %v123
    %214 = vmatprep.subr.mxu0 0.0
    %215 = vmatpush1.msra.mxu0 %v124
    %216 = vmatprep.subr.mxu0 0.0
    %217 = vmatpush1.msra.mxu0 %v125
    %218 = vmatprep.subr.mxu0 0.0
    %219 = vmatpush1.msra.mxu0 %v126
    %220 = vmatprep.subr.mxu0 0.0
    %221 = vmatpush1.msra.mxu0 0.0
    %222 = vmatprep.subr.mxu0 0.0
    %223 = vmatpush1.msra.mxu0 0.0
    %224 = vmatprep.subr.mxu0 0.0
    %225 = vmatpush1.msra.mxu0 0.0
    %226 = vmatprep.subr.mxu0 0.0
    %227 = vmatpush1.msra.mxu0 0.0
    %228 = vmatprep.subr.mxu0 0.0
    %229 = vmatpush1.msra.mxu0 0.0
    %230 = vmatprep.subr.mxu0 0.0
    %231 = vmatpush1.msra.mxu0 0.0
    %232 = vmatprep.subr.mxu0 0.0
    %233 = vmatpush1.msra.mxu0 0.0
    %234 = vmatprep.subr.mxu0 0.0
    %235 = vmatpush1.msra.mxu0 0.0
    %236 = vmatprep.subr.mxu0 0.0
    %237 = vmatpush1.msra.mxu0 0.0
    %238 = vmatprep.subr.mxu0 0.0
    %239 = vmatpush1.msra.mxu0 0.0
    %240 = vmatprep.subr.mxu0 0.0
    %241 = vmatpush1.msra.mxu0 0.0
    %242 = vmatprep.subr.mxu0 0.0
    %243 = vmatpush1.msra.mxu0 0.0
    %244 = vmatprep.subr.mxu0 0.0
    %245 = vmatpush1.msra.mxu0 0.0
    %246 = vmatprep.subr.mxu0 0.0
    %247 = vmatpush1.msra.mxu0 0.0
    %248 = vmatprep.subr.mxu0 0.0
    %249 = vmatpush1.msra.mxu0 0.0
    %250 = vmatprep.subr.mxu0 0.0
    %251 = vmatpush1.msra.mxu0 0.0
    %252 = vmatprep.subr.mxu0 0.0
    %253 = vmatpush1.msra.mxu0 0.0
    %254 = vmatprep.subr.mxu0 0.0
    %255 = vmatpush1.msra.mxu0 0.0
    %256 = vmatprep.subr.mxu0 0.0
    %257 = vmatpush1.msra.mxu0 0.0
    %258 = vmatprep.subr.mxu0 0.0
    %259 = vmatpush1.msra.mxu0 0.0
    %260 = vmatprep.subr.mxu0 0.0
    %261 = vmatpush1.msra.mxu0 0.0
    %262 = vmatprep.subr.mxu0 0.0
    %263 = vmatpush1.msra.mxu0 0.0
    %264 = vmatprep.subr.mxu0 0.0
    %265 = vmatpush1.msra.mxu0 0.0
    %266 = vmatprep.subr.mxu0 0.0
    %267 = vmatpush1.msra.mxu0 0.0
    %268 = vmatprep.subr.mxu0 0.0
    %269 = vmatpush1.msra.mxu0 0.0
    %270 = vmatprep.subr.mxu0 0.0
    %271 = vmatpush1.msra.mxu0 0.0
    %272 = vmatprep.subr.mxu0 0.0
    %273 = vmatpush1.msra.mxu0 0.0
    %274 = vmatprep.subr.mxu0 0.0
    %275 = vmatpush1.msra.mxu0 0.0
    %276 = vmatprep.mubr.f32.mxu0 0.0
    %277 = vmatmul.mubr.f32.gmra.mrb[0].mxu0 %v39
    %v278 = vpop.f32.mrb[0].mxu0
    %v279 = vadd.f32 %v210, %v278
    %v280 = vpop.f32.mrb[0].mxu0
    %281 = vmatprep.mubr.f32.mxu0 0.0
    %282 = vmatmul.mubr.f32.gmra.mrb[0].mxu0 %v42
    %v283 = vpop.f32.mrb[0].mxu0
    %v284 = vadd.f32 %v211, %v283
    %v285 = vpop.f32.mrb[0].mxu0
    %286 = vdwg.mxu0
    %287 = vst [vmem:[#allocation2] sm:$0xff] %v279
    %288 = vst [vmem:[#allocation2 + $0x8] sm:$0xff] %v284
    %289 = vmax.xlane.f32.xlu0 %v279
    %v290 = vpop.xlane.xlu0 %289
    %291 = vmax.xlane.f32.xlu0 %v284
    %v292 = vpop.xlane.xlu0 %291
    %v293 = vsub.f32 %v279, %v290
    %v294 = vsub.f32 %v284, %v292
    %v295 = vmul.f32 %v293, 1.442695
    %v296 = vpow.pop %v295
    %v297 = vmul.f32 %v294, 1.442695
    %v298 = vpow.pop %v297
    %299 = vadd.xlane.f32.xlu0 %v296
    %v300 = vpop.xlane.xlu0 %299
    %301 = vadd.xlane.f32.xlu0 %v298
    %v302 = vpop.xlane.xlu0 %301
    %v303 = vlog2.pop %v300
    %v304 = vmul.f32 %v303, 0.6931472
    %v305 = vlog2.pop %v302
    %v306 = vmul.f32 %v305, 0.6931472
    %v307 = vadd.f32 %v290, %v304
    %v308 = vadd.f32 %v292, %v306
    %v309 = vlaneseq
    %v310 = vand.u32 %v309, 127
    %v311 = vld [vmem:[%s5] sm:$0xff]
    %v312 = vld [vmem:[%s5 + $0x8] sm:$0xff]
    %313 = vset.pattern.permute.xlu0 0
    %314 = vperm.xlu0 %313, %v311
    %v315 = vpop.permute.xlu0 %314
    %316 = vset.pattern.permute.xlu0 0
    %317 = vperm.xlu0 %316, %v312
    %v318 = vpop.permute.xlu0 %317
    %vm319 = vcmp.eq.s32.totalorder %v310, %v315
    %vm320 = vcmp.eq.s32.totalorder %v310, %v318
    %v321 = vsel %vm319, %v279, 0.0
    %v322 = vsel %vm320, %v284, 0.0
    %323 = vadd.xlane.f32.xlu0 %v321
    %v324 = vpop.xlane.xlu0 %323
    %325 = vadd.xlane.f32.xlu0 %v322
    %v326 = vpop.xlane.xlu0 %325
    %v327 = vsub.f32 %v307, %v324
    %v328 = vsub.f32 %v308, %v326
    %v329 = vld [vmem:[%s6] sm:$0xff]
    %v330 = vld [vmem:[%s6 + $0x8] sm:$0xff]
    %v331 = vmul.f32 %v327, %v329
    %v332 = vmul.f32 %v328, %v330
    %vm333 = vcmask 7168
    %334 = vst.msk [vmem:[%s8] sm:$0xff] %vm333, %v331
    %335 = vst.msk [vmem:[%s8 + $0x8] sm:$0xff] %vm333, %v332
    %v336 = vsel %vm333, %v331, 0.0
    %v337 = vsel %vm333, %v332, 0.0
    %v338 = vadd.f32 %v336, %v337
    %v339 = vrot.slane %v338, 4
    %v340 = vadd.f32 %v338, %v339
    %v341 = vrot.slane %v340, 2
    %v342 = vadd.f32 %v340, %v341
    %v343 = vrot.slane %v342, 1
    %v344 = vadd.f32 %v342, %v343
    %vm345 = vcmask 0
    %346 = vst.msk [vmem:[#allocation4] sm:$0x1] %vm345, %v344
    // Predicated region
    $region30: #{forward.1} parent=1 // pred_check
      _
    $region31: #{forward.1} parent=1 // pred_check_branch
      %348 = sbr.rel (0) target = $region33
    $region32: #{forward.1} parent=1 // pred_region
      %s350 = ssub.s32 256, 256
      %351 = vsyncadd [#allocation3], %s350
      %s352 = sshll.u32 [#allocation2], 4
      %s353 = int_to_ptr.vmem [resolvable:$true] %s352
      %358 = dma.vmem_to_hbm [thread:$0]  %s353, 256, %s7, [#allocation3], 128, 128, 8
    $region33: #{forward.1} parent=1 // pred_fallthru
      _
    // Predicated region
    $region34: #{forward.1} parent=1 // pred_check
      _
    $region35: #{forward.1} parent=1 // pred_check_branch
      %360 = sbr.rel (0) target = $region37
    $region36: #{forward.1} parent=1 // pred_region
      _
    $region37: #{forward.1} parent=1 // pred_fallthru
      _
    // Predicated region
    $region38: #{forward.1} parent=1 // pred_check
      _
    $region39: #{forward.1} parent=1 // pred_check_branch
      %362 = sbr.rel (0) target = $region41
    $region40: #{forward.1} parent=1 // pred_region
      %s364 = ssub.s32 16, 16
      %365 = vsyncadd [#allocation5], %s364
      %s367 = sshll.u32 [#allocation4], 4
      %s368 = int_to_ptr.vmem [resolvable:$true] %s367
      %370 = dma.vmem_to_hbm [thread:$0]  %s368, 16, %s9, [#allocation5]
    $region41: #{forward.1} parent=1 // pred_fallthru
      _
    // Predicated region
    $region42: #{forward.1} parent=1 // pred_check
      _
    $region43: #{forward.1} parent=1 // pred_check_branch
      %372 = sbr.rel (0) target = $region45
    $region44: #{forward.1} parent=1 // pred_region
      %373 = dma.done [#allocation3], 256
    $region45: #{forward.1} parent=1 // pred_fallthru
      _
    // Predicated region
    $region46: #{forward.1} parent=1 // pred_check
      _
    $region47: #{forward.1} parent=1 // pred_check_branch
      %375 = sbr.rel (0) target = $region49
    $region48: #{forward.1} parent=1 // pred_region
      _
    $region49: #{forward.1} parent=1 // pred_fallthru
      _
    // Predicated region
    $region50: #{forward.1} parent=1 // pred_check
      _
    $region51: #{forward.1} parent=1 // pred_check_branch
      %377 = sbr.rel (0) target = $region53
    $region52: #{forward.1} parent=1 // pred_region
      %378 = dma.done [#allocation5], 16
    $region53: #{forward.1} parent=1 // pred_fallthru
      _
    %379 = vsyncpa [#allocation3], 1
    %380 = vsyncpa [#allocation5], 1

</llo_original>
